<compile_context>
chip_gen: v7x
topology: tpu7x:2x2x1
jax: 0.10.0
libtpu: 0.0.40
codegen_flags: <defaults>
</compile_context>

<pallas_src>
import functools

import jax
import jax.numpy as jnp
from jax.experimental import pallas as pl
from jax.experimental.pallas import tpu as pltpu


# Parameter-pack row layout inside the single (PACK_ROWS, PACK_LANES) f32 block:
#   row 0 : generator weight over [noise | cond]   (lanes 0 .. Nn+Nc-1)
#   row 1 : discriminator dense1 bias b1           (lanes 0 .. H-1)
#   row 2 : discriminator dense2 weight w2^T       (lanes 0 .. H-1)
#   row 3 : lane 0 = generator bias, lane 1 = discriminator dense2 bias
#   row 4 : discriminator dense1 weight W1, data row
#   row 5+: discriminator dense1 weight W1, cond rows (cond_dim of them)
PACK_ROWS = 8
PACK_LANES = 128


def _gan_kernel(noise_ref, data_ref, cond_ref, p_ref, out_ref, *,
                noise_dim, cond_dim, hidden, batch):
    H = hidden
    B = batch

    noise = noise_ref[...]        # (B, Nn)
    data = data_ref[...]          # (B, 1)
    cond = cond_ref[...]          # (B, Nc)
    p = p_ref[...]                # (PACK_ROWS, PACK_LANES)

    # ---- Generator: Linear(cat(noise, cond)) on VPU/XLU (out width 1) ----
    gen_out = (jnp.sum(noise * p[0:1, 0:noise_dim], axis=-1, keepdims=True)
               + jnp.sum(cond * p[0:1, noise_dim:noise_dim + cond_dim],
                         axis=-1, keepdims=True)
               + p[3:4, 0:1])                                   # (B, 1)

    # ---- Discriminator dense1, cond contribution shared by both passes ----
    # h_cond = b1 + sum_c cond[:, c] * W1_cond_row[c]           # (B, H)
    h_cond = p[1:2, 0:H]
    for c in range(cond_dim):                 # cond_dim is tiny (1 here)
        h_cond = h_cond + cond[:, c:c + 1] * p[5 + c:6 + c, 0:H]

    w1_data = p[4:5, 0:H]                                       # (1, H)
    h_real = jnp.maximum(h_cond + data * w1_data, 0.0)          # (B, H)
    h_gen = jnp.maximum(h_cond + gen_out * w1_data, 0.0)        # (B, H)

    # ---- dense2: width-H lane reduce (stays off the MXU) ----
    w2 = p[2:3, 0:H]
    b2 = p[3:4, 1:2]
    logit_real = jnp.sum(h_real * w2, axis=-1, keepdims=True) + b2   # (B, 1)
    logit_gen = jnp.sum(h_gen * w2, axis=-1, keepdims=True) + b2     # (B, 1)

    # Numerically stable sigmoid.  Reciprocal goes to the EUP (approx=True);
    # one Newton-Raphson step on the VPU restores full f32 accuracy so the
    # 1e-5 parity check against the pure-JAX reference still holds.
    def stable_sigmoid(z):
        e = jnp.exp(-jnp.abs(z))
        d = 1.0 + e
        r = pl.reciprocal(d, approx=True)
        r = r * (2.0 - d * r)                  # Newton-Raphson refinement
        return jnp.where(z >= 0.0, r, e * r)

    p_train = stable_sigmoid(logit_real)       # (B, 1)
    p_gen = stable_sigmoid(logit_gen)          # (B, 1)

    eps = 1e-10
    inv_b = 1.0 / B
    gen_loss = -jnp.sum(jnp.log(p_gen + eps), axis=0, keepdims=True) * inv_b
    disc_loss = (-jnp.sum(jnp.log(p_train + eps) + jnp.log(1.0 - p_gen + eps),
                          axis=0, keepdims=True) * inv_b)        # (1, 1)

    # Lane-dense (full-vreg) output: gen_loss in lane 0, disc_loss in lane 1,
    # zeros elsewhere -> single unmasked store + aligned writeback DMA.
    lane = jax.lax.broadcasted_iota(jnp.int32, (PACK_ROWS, PACK_LANES), 1)
    out_ref[...] = jnp.where(lane == 0, gen_loss,
                             jnp.where(lane == 1, disc_loss, 0.0))


def gan_forward(noise, real_data, cond, packed_params, *, hidden):
    B, noise_dim = noise.shape
    data_dim = real_data.shape[1]
    cond_dim = cond.shape[1]

    # The generator output has width 1, so (as in the original module) the
    # discriminator's data input must also have width 1.
    assert data_dim == 1, "generator output width is 1, so data_dim must be 1"
    assert 5 + cond_dim <= packed_params.shape[0]
    assert noise_dim + cond_dim <= PACK_LANES and hidden <= PACK_LANES

    kernel = functools.partial(_gan_kernel, noise_dim=noise_dim,
                               cond_dim=cond_dim, hidden=hidden, batch=B)

    flops = (2 * B * (noise_dim + cond_dim)     # generator reduce
             + 2 * B * cond_dim * hidden        # shared cond rank-1 updates
             + 2 * 2 * B * hidden               # data/gen rank-1 updates
             + 2 * 2 * B * hidden)              # dense2 reduces
    cost = pl.CostEstimate(
        flops=flops,
        transcendentals=7 * B,                  # exp(2B) + log(3B) + rcp(2B)
        bytes_accessed=(noise.size + real_data.size + cond.size
                        + packed_params.size + PACK_ROWS * PACK_LANES) * 4)

    # NOTE: no grid at these toy shapes (everything fits in a few vregs).
    # For realistic batches, add a 1-D batch grid with >=512-row tiles and
    # dimension_semantics=("parallel",), emitting per-block partial loss sums
    # that are reduced outside (so v7x's two TensorCores split the batch).
    out = pl.pallas_call(
        kernel,
        out_shape=jax.ShapeDtypeStruct((PACK_ROWS, PACK_LANES), jnp.float32),
        in_specs=[pl.BlockSpec((B, noise_dim), lambda: (0, 0)),
                  pl.BlockSpec((B, data_dim), lambda: (0, 0)),
                  pl.BlockSpec((B, cond_dim), lambda: (0, 0)),
                  pl.BlockSpec(packed_params.shape, lambda: (0, 0))],
        out_specs=pl.BlockSpec((PACK_ROWS, PACK_LANES), lambda: (0, 0)),
        cost_estimate=cost,
    )(noise, real_data, cond, packed_params)
    return out[0, 0], out[0, 1]


def init_params(key, noise_dim, data_dim, cond_dim, hidden=10):
    """PyTorch nn.Linear default init: U(-1/sqrt(fan_in), 1/sqrt(fan_in)).

    Weights are stored transposed vs. PyTorch, i.e. (in_features, out_features).
    """
    ks = jax.random.split(key, 6)

    def uniform(k, shape, fan_in):
        bound = 1.0 / jnp.sqrt(jnp.float32(fan_in))
        return jax.random.uniform(k, shape, jnp.float32, -bound, bound)

    g_in = noise_dim + cond_dim
    d_in = data_dim + cond_dim
    return {
        "gen_w": uniform(ks[0], (g_in, 1), g_in),
        "gen_b": uniform(ks[1], (1,), g_in),
        "d1_w": uniform(ks[2], (d_in, hidden), d_in),
        "d1_b": uniform(ks[3], (hidden,), d_in),
        "d2_w": uniform(ks[4], (hidden, 1), hidden),
        "d2_b": uniform(ks[5], (1,), hidden),
    }


def pack_params(params, noise_dim, data_dim, cond_dim, hidden):
    """One-time packing of all GAN weights into a single (8, 128) f32 block."""
    assert data_dim == 1
    assert 5 + cond_dim <= PACK_ROWS
    assert noise_dim + cond_dim <= PACK_LANES and hidden <= PACK_LANES
    P = jnp.zeros((PACK_ROWS, PACK_LANES), jnp.float32)
    # Generator weight over [noise | cond] (the generator input ordering).
    P = P.at[0, :noise_dim + cond_dim].set(params["gen_w"][:, 0])
    P = P.at[1, :hidden].set(params["d1_b"])
    P = P.at[2, :hidden].set(params["d2_w"][:, 0])
    P = P.at[3, 0].set(params["gen_b"][0])
    P = P.at[3, 1].set(params["d2_b"][0])
    P = P.at[4, :hidden].set(params["d1_w"][0])                     # data row
    P = P.at[5:5 + cond_dim, :hidden].set(params["d1_w"][1:])       # cond rows
    return P


def reference(noise, real_data, cond, params):
    """Pure-JAX reference (same math as the PyTorch module)."""
    gen_in = jnp.concatenate([noise, cond], axis=1)
    gen_out = gen_in @ params["gen_w"] + params["gen_b"]

    def disc(x):
        din = jnp.concatenate([x, cond], axis=1)
        h = jnp.maximum(din @ params["d1_w"] + params["d1_b"], 0.0)
        return jax.nn.sigmoid(h @ params["d2_w"] + params["d2_b"])

    p_tr, p_gn = disc(real_data), disc(gen_out)
    gen_loss = -jnp.mean(jnp.log(p_gn + 1e-10))
    disc_loss = -jnp.mean(jnp.log(p_tr + 1e-10) + jnp.log(1.0 - p_gn + 1e-10))
    return gen_loss, disc_loss


if __name__ == "__main__":
    # Shapes from the ExampleGAN docstring: batch=16, noise=(16,2),
    # data=(16,1), conditional=(16,1), hidden=10.
    batch, noise_dim, data_dim, cond_dim, hidden = 16, 2, 1, 1, 10

    key = jax.random.PRNGKey(0)
    k_noise, k_data, k_cond, k_params = jax.random.split(key, 4)

    noise = jax.random.uniform(k_noise, (batch, noise_dim), jnp.float32)
    real_data = jax.random.uniform(k_data, (batch, data_dim), jnp.float32)
    cond = jax.random.uniform(k_cond, (batch, cond_dim), jnp.float32)

    params = init_params(k_params, noise_dim, data_dim, cond_dim, hidden)
    packed = pack_params(params, noise_dim, data_dim, cond_dim, hidden)

    fwd = jax.jit(gan_forward, static_argnames=("hidden",))
    gen_loss, disc_loss = fwd(noise, real_data, cond, packed, hidden=hidden)
    jax.block_until_ready((gen_loss, disc_loss))

    ref_gen, ref_disc = reference(noise, real_data, cond, params)
    assert jnp.allclose(gen_loss, ref_gen, atol=1e-5, rtol=1e-5), (gen_loss, ref_gen)
    assert jnp.allclose(disc_loss, ref_disc, atol=1e-5, rtol=1e-5), (disc_loss, ref_disc)

    print("KERNEL_OK")
</pallas_src>

<mosaic_0001>
module attributes {stable_mosaic.version = 11 : i64} {
  func.func @_gan_kernel(%arg0: memref<16x2xf32, #tpu.memory_space<vmem>>, %arg1: memref<16x1xf32, #tpu.memory_space<vmem>>, %arg2: memref<16x1xf32, #tpu.memory_space<vmem>>, %arg3: memref<8x128xf32, #tpu.memory_space<vmem>>, %arg4: memref<8x128xf32, #tpu.memory_space<vmem>>) attributes {dimension_semantics = [], scalar_prefetch = 0 : i64, scratch_operands = 0 : i64, tpu.core_type = #tpu.core_type<tc>} {
    %c0 = arith.constant 0 : index
    %c0_0 = arith.constant 0 : index
    %0 = vector.load %arg0[%c0, %c0_0] : memref<16x2xf32, #tpu.memory_space<vmem>>, vector<16x2xf32>
    %c0_1 = arith.constant 0 : index
    %c0_2 = arith.constant 0 : index
    %1 = vector.load %arg1[%c0_1, %c0_2] : memref<16x1xf32, #tpu.memory_space<vmem>>, vector<16x1xf32>
    %c0_3 = arith.constant 0 : index
    %c0_4 = arith.constant 0 : index
    %2 = vector.load %arg2[%c0_3, %c0_4] : memref<16x1xf32, #tpu.memory_space<vmem>>, vector<16x1xf32>
    %c0_5 = arith.constant 0 : index
    %c0_6 = arith.constant 0 : index
    %3 = vector.load %arg3[%c0_5, %c0_6] : memref<8x128xf32, #tpu.memory_space<vmem>>, vector<8x128xf32>
    %4 = vector.extract_strided_slice %3 {offsets = [0, 0], sizes = [1, 2], strides = [1, 1]} : vector<8x128xf32> to vector<1x2xf32>
    %5 = vector.broadcast %4 : vector<1x2xf32> to vector<16x2xf32>
    %6 = arith.mulf %0, %5 : vector<16x2xf32>
    %cst = arith.constant dense<0.000000e+00> : vector<16xf32>
    %7 = vector.multi_reduction <add>, %6, %cst [1] : vector<16x2xf32> to vector<16xf32>
    %8 = vector.shape_cast %7 : vector<16xf32> to vector<16x1xf32>
    %9 = vector.extract_strided_slice %3 {offsets = [0, 2], sizes = [1, 1], strides = [1, 1]} : vector<8x128xf32> to vector<1x1xf32>
    %10 = vector.broadcast %9 : vector<1x1xf32> to vector<16x1xf32>
    %11 = arith.mulf %2, %10 : vector<16x1xf32>
    %cst_7 = arith.constant dense<0.000000e+00> : vector<16xf32>
    %12 = vector.multi_reduction <add>, %11, %cst_7 [1] : vector<16x1xf32> to vector<16xf32>
    %13 = vector.shape_cast %12 : vector<16xf32> to vector<16x1xf32>
    %14 = arith.addf %8, %13 : vector<16x1xf32>
    %15 = vector.extract_strided_slice %3 {offsets = [3, 0], sizes = [1, 1], strides = [1, 1]} : vector<8x128xf32> to vector<1x1xf32>
    %16 = vector.broadcast %15 : vector<1x1xf32> to vector<16x1xf32>
    %17 = arith.addf %14, %16 : vector<16x1xf32>
    %18 = vector.extract_strided_slice %3 {offsets = [1, 0], sizes = [1, 10], strides = [1, 1]} : vector<8x128xf32> to vector<1x10xf32>
    %19 = vector.extract_strided_slice %3 {offsets = [5, 0], sizes = [1, 10], strides = [1, 1]} : vector<8x128xf32> to vector<1x10xf32>
    %20 = vector.broadcast %2 : vector<16x1xf32> to vector<16x10xf32>
    %21 = vector.broadcast %19 : vector<1x10xf32> to vector<16x10xf32>
    %22 = arith.mulf %20, %21 : vector<16x10xf32>
    %23 = vector.broadcast %18 : vector<1x10xf32> to vector<16x10xf32>
    %24 = arith.addf %23, %22 : vector<16x10xf32>
    %25 = vector.extract_strided_slice %3 {offsets = [4, 0], sizes = [1, 10], strides = [1, 1]} : vector<8x128xf32> to vector<1x10xf32>
    %26 = vector.broadcast %1 : vector<16x1xf32> to vector<16x10xf32>
    %27 = vector.broadcast %25 : vector<1x10xf32> to vector<16x10xf32>
    %28 = arith.mulf %26, %27 : vector<16x10xf32>
    %29 = arith.addf %24, %28 : vector<16x10xf32>
    %cst_8 = arith.constant 0.000000e+00 : f32
    %30 = vector.broadcast %cst_8 : f32 to vector<16x10xf32>
    %31 = arith.maximumf %29, %30 : vector<16x10xf32>
    %32 = vector.broadcast %17 : vector<16x1xf32> to vector<16x10xf32>
    %33 = vector.broadcast %25 : vector<1x10xf32> to vector<16x10xf32>
    %34 = arith.mulf %32, %33 : vector<16x10xf32>
    %35 = arith.addf %24, %34 : vector<16x10xf32>
    %cst_9 = arith.constant 0.000000e+00 : f32
    %36 = vector.broadcast %cst_9 : f32 to vector<16x10xf32>
    %37 = arith.maximumf %35, %36 : vector<16x10xf32>
    %38 = vector.extract_strided_slice %3 {offsets = [2, 0], sizes = [1, 10], strides = [1, 1]} : vector<8x128xf32> to vector<1x10xf32>
    %39 = vector.extract_strided_slice %3 {offsets = [3, 1], sizes = [1, 1], strides = [1, 1]} : vector<8x128xf32> to vector<1x1xf32>
    %40 = vector.broadcast %38 : vector<1x10xf32> to vector<16x10xf32>
    %41 = arith.mulf %31, %40 : vector<16x10xf32>
    %cst_10 = arith.constant dense<0.000000e+00> : vector<16xf32>
    %42 = vector.multi_reduction <add>, %41, %cst_10 [1] : vector<16x10xf32> to vector<16xf32>
    %43 = vector.shape_cast %42 : vector<16xf32> to vector<16x1xf32>
    %44 = vector.broadcast %39 : vector<1x1xf32> to vector<16x1xf32>
    %45 = arith.addf %43, %44 : vector<16x1xf32>
    %46 = vector.broadcast %38 : vector<1x10xf32> to vector<16x10xf32>
    %47 = arith.mulf %37, %46 : vector<16x10xf32>
    %cst_11 = arith.constant dense<0.000000e+00> : vector<16xf32>
    %48 = vector.multi_reduction <add>, %47, %cst_11 [1] : vector<16x10xf32> to vector<16xf32>
    %49 = vector.shape_cast %48 : vector<16xf32> to vector<16x1xf32>
    %50 = vector.broadcast %39 : vector<1x1xf32> to vector<16x1xf32>
    %51 = arith.addf %49, %50 : vector<16x1xf32>
    %52 = math.absf %45 : vector<16x1xf32>
    %cst_12 = arith.constant 0.000000e+00 : f32
    %53 = vector.broadcast %cst_12 : f32 to vector<16x1xf32>
    %54 = arith.subf %53, %52 : vector<16x1xf32>
    %55 = math.exp %54 : vector<16x1xf32>
    %cst_13 = arith.constant 1.000000e+00 : f32
    %56 = vector.broadcast %cst_13 : f32 to vector<16x1xf32>
    %57 = arith.addf %56, %55 : vector<16x1xf32>
    %58 = tpu.reciprocal %57 {approx = true} : vector<16x1xf32> -> vector<16x1xf32>
    %59 = arith.mulf %57, %58 : vector<16x1xf32>
    %cst_14 = arith.constant 2.000000e+00 : f32
    %60 = vector.broadcast %cst_14 : f32 to vector<16x1xf32>
    %61 = arith.subf %60, %59 : vector<16x1xf32>
    %62 = arith.mulf %58, %61 : vector<16x1xf32>
    %cst_15 = arith.constant 0.000000e+00 : f32
    %63 = vector.broadcast %cst_15 : f32 to vector<16x1xf32>
    %64 = arith.cmpf oge, %45, %63 : vector<16x1xf32>
    %65 = arith.mulf %55, %62 : vector<16x1xf32>
    %66 = arith.select %64, %62, %65 : vector<16x1xi1>, vector<16x1xf32>
    %67 = math.absf %51 : vector<16x1xf32>
    %cst_16 = arith.constant 0.000000e+00 : f32
    %68 = vector.broadcast %cst_16 : f32 to vector<16x1xf32>
    %69 = arith.subf %68, %67 : vector<16x1xf32>
    %70 = math.exp %69 : vector<16x1xf32>
    %cst_17 = arith.constant 1.000000e+00 : f32
    %71 = vector.broadcast %cst_17 : f32 to vector<16x1xf32>
    %72 = arith.addf %71, %70 : vector<16x1xf32>
    %73 = tpu.reciprocal %72 {approx = true} : vector<16x1xf32> -> vector<16x1xf32>
    %74 = arith.mulf %72, %73 : vector<16x1xf32>
    %cst_18 = arith.constant 2.000000e+00 : f32
    %75 = vector.broadcast %cst_18 : f32 to vector<16x1xf32>
    %76 = arith.subf %75, %74 : vector<16x1xf32>
    %77 = arith.mulf %73, %76 : vector<16x1xf32>
    %cst_19 = arith.constant 0.000000e+00 : f32
    %78 = vector.broadcast %cst_19 : f32 to vector<16x1xf32>
    %79 = arith.cmpf oge, %51, %78 : vector<16x1xf32>
    %80 = arith.mulf %70, %77 : vector<16x1xf32>
    %81 = arith.select %79, %77, %80 : vector<16x1xi1>, vector<16x1xf32>
    %cst_20 = arith.constant 1.000000e-10 : f32
    %82 = vector.broadcast %cst_20 : f32 to vector<16x1xf32>
    %83 = arith.addf %81, %82 : vector<16x1xf32>
    %84 = math.log %83 : vector<16x1xf32>
    %cst_21 = arith.constant dense<0.000000e+00> : vector<1xf32>
    %85 = vector.multi_reduction <add>, %84, %cst_21 [0] : vector<16x1xf32> to vector<1xf32>
    %86 = vector.shape_cast %85 : vector<1xf32> to vector<1x1xf32>
    %cst_22 = arith.constant 0.000000e+00 : f32
    %87 = vector.broadcast %cst_22 : f32 to vector<1x1xf32>
    %88 = arith.subf %87, %86 : vector<1x1xf32>
    %cst_23 = arith.constant 6.250000e-02 : f32
    %89 = vector.broadcast %cst_23 : f32 to vector<1x1xf32>
    %90 = arith.mulf %88, %89 : vector<1x1xf32>
    %cst_24 = arith.constant 1.000000e-10 : f32
    %91 = vector.broadcast %cst_24 : f32 to vector<16x1xf32>
    %92 = arith.addf %66, %91 : vector<16x1xf32>
    %93 = math.log %92 : vector<16x1xf32>
    %cst_25 = arith.constant 1.000000e+00 : f32
    %94 = vector.broadcast %cst_25 : f32 to vector<16x1xf32>
    %95 = arith.subf %94, %81 : vector<16x1xf32>
    %cst_26 = arith.constant 1.000000e-10 : f32
    %96 = vector.broadcast %cst_26 : f32 to vector<16x1xf32>
    %97 = arith.addf %95, %96 : vector<16x1xf32>
    %98 = math.log %97 : vector<16x1xf32>
    %99 = arith.addf %93, %98 : vector<16x1xf32>
    %cst_27 = arith.constant dense<0.000000e+00> : vector<1xf32>
    %100 = vector.multi_reduction <add>, %99, %cst_27 [0] : vector<16x1xf32> to vector<1xf32>
    %101 = vector.shape_cast %100 : vector<1xf32> to vector<1x1xf32>
    %cst_28 = arith.constant 0.000000e+00 : f32
    %102 = vector.broadcast %cst_28 : f32 to vector<1x1xf32>
    %103 = arith.subf %102, %101 : vector<1x1xf32>
    %cst_29 = arith.constant 6.250000e-02 : f32
    %104 = vector.broadcast %cst_29 : f32 to vector<1x1xf32>
    %105 = arith.mulf %103, %104 : vector<1x1xf32>
    %106 = tpu.iota {dimensions = array<i32: 1>} : vector<8x128xi32>
    %c0_i32 = arith.constant 0 : i32
    %107 = vector.broadcast %c0_i32 : i32 to vector<8x128xi32>
    %108 = arith.cmpi eq, %106, %107 : vector<8x128xi32>
    %c1_i32 = arith.constant 1 : i32
    %109 = vector.broadcast %c1_i32 : i32 to vector<8x128xi32>
    %110 = arith.cmpi eq, %106, %109 : vector<8x128xi32>
    %cst_30 = arith.constant 0.000000e+00 : f32
    %111 = vector.shape_cast %105 : vector<1x1xf32> to vector<1x1xf32>
    %112 = vector.broadcast %111 : vector<1x1xf32> to vector<8x128xf32>
    %113 = vector.broadcast %cst_30 : f32 to vector<8x128xf32>
    %114 = arith.select %110, %112, %113 : vector<8x128xi1>, vector<8x128xf32>
    %115 = vector.shape_cast %90 : vector<1x1xf32> to vector<1x1xf32>
    %116 = vector.broadcast %115 : vector<1x1xf32> to vector<8x128xf32>
    %117 = arith.select %108, %116, %114 : vector<8x128xi1>, vector<8x128xf32>
    %c0_31 = arith.constant 0 : index
    %c0_32 = arith.constant 0 : index
    %118 = vector.load %arg4[%c0_31, %c0_32] : memref<8x128xf32, #tpu.memory_space<vmem>>, vector<8x128xf32>
    tpu.vector_store %arg4[%c0_31, %c0_32], %117 {strides = array<i32>} : memref<8x128xf32, #tpu.memory_space<vmem>>, vector<8x128xf32>,
    return
  }
}

</mosaic_0001>

<llo_original>
// kernel: gan_forward.1
$region0: #{gan_forward.1}
  #allocation0 [shape = 'u32[]', space=smem, size = 0x4, offset = 0x4, fixed_abs, tag = 'smem constant byte address 0x4 - core index']
  #allocation1 [shape = 'u32[144,128]{1,0:T(1,128)}', space=vmem, size = 0x12000, scoped, tag = 'internal scratch']
  %s0 = inlined_call_operand.vmem [shape: f32[16,2], index: 0, kind: input, shape index: {}]
  %s1 = inlined_call_operand.vmem [shape: f32[16,1], index: 1, kind: input, shape index: {}]
  %s2 = inlined_call_operand.vmem [shape: f32[16,1], index: 2, kind: input, shape index: {}]
  %s3 = inlined_call_operand.vmem [shape: f32[8,128], index: 3, kind: input, shape index: {}]
  %s4 = inlined_call_operand.vmem [shape: f32[8,128], index: 4, kind: output, shape index: {}]
  %s5 = sld [smem:[#allocation0]]
  $region26: #{gan_forward.1} parent=0
    _
  %s7 = ssub.s32 1, %s5
  %s8 = scalar_select 0, %s7, %s5
  // Predicated region
  $region2: #{gan_forward.1} parent=0 // pred_check
    _
  $region3: #{gan_forward.1} parent=0 // pred_check_branch
    %10 = sbr.rel (0) target = $region5
  $region4: #{gan_forward.1} parent=0 // pred_region
    _
  $region5: #{gan_forward.1} parent=0 // pred_fallthru
    _
  // Predicated region
  $region6: #{gan_forward.1} parent=0 // pred_check
    _
  $region7: #{gan_forward.1} parent=0 // pred_check_branch
    %12 = sbr.rel (0) target = $region9
  $region8: #{gan_forward.1} parent=0 // pred_region
    _
  $region9: #{gan_forward.1} parent=0 // pred_fallthru
    _
  // Predicated region
  $region10: #{gan_forward.1} parent=0 // pred_check
    _
  $region11: #{gan_forward.1} parent=0 // pred_check_branch
    %14 = sbr.rel (0) target = $region13
  $region12: #{gan_forward.1} parent=0 // pred_region
    _
  $region13: #{gan_forward.1} parent=0 // pred_fallthru
    _
  // Predicated region
  $region14: #{gan_forward.1} parent=0 // pred_check
    _
  $region15: #{gan_forward.1} parent=0 // pred_check_branch
    %16 = sbr.rel (0) target = $region17
  $region16: #{gan_forward.1} parent=0 // pred_region
    _
  $region17: #{gan_forward.1} parent=0 // pred_fallthru
    _
  %v17 = vld [vmem:[%s0] sm:$0xff]
  %v18 = vld [vmem:[%s0 + $0x8] sm:$0xff]
  %v19 = vld [vmem:[%s1] sm:$0xff]
  %v20 = vld [vmem:[%s1 + $0x8] sm:$0xff]
  %v21 = vld [vmem:[%s2] sm:$0xff]
  %v22 = vld [vmem:[%s2 + $0x8] sm:$0xff]
  %v23 = vld [vmem:[%s3] sm:$0xff]
  %v24 = vlaneseq
  %v25 = vshrl.u32 %v24, 7
  %v26 = vsub.s32 0, %v25
  %v27 = vrot.slane %v23, %v26
  %v28 = vmul.f32 %v17, %v27
  %v29 = vmul.f32 %v18, %v27
  %vm30 = vcmask 15360
  %v31 = vsel %vm30, %v28, 0.0
  %32 = vadd.xlane.f32.xlu0 %v31
  %v33 = vpop.xlane.xlu0 %32
  %v34 = vsel %vm30, %v29, 0.0
  %35 = vadd.xlane.f32.xlu0 %v34
  %v36 = vpop.xlane.xlu0 %35
  %38 = vrot.lane.b32.xlu0 %v27, 126
  %v39 = vpop.permute.xlu0 %38
  %v41 = vmul.f32 %v21, %v39
  %v42 = vmul.f32 %v22, %v39
  %v43 = vadd.f32 %v41, 0.0
  %v44 = vadd.f32 %v42, 0.0
  %v45 = vadd.f32 %v33, %v43
  %v46 = vadd.f32 %v36, %v44
  %v47 = vlaneseq
  %v48 = vshrl.u32 %v47, 7
  %v49 = vsub.s32 3, %v48
  %v50 = vrot.slane %v23, %v49
  %v51 = vadd.f32 %v45, %v50
  %v52 = vadd.f32 %v46, %v50
  %54 = vset.pattern.permute.xlu0 0
  %55 = vperm.xlu0 %54, %v21
  %v56 = vpop.permute.xlu0 %55
  %59 = vset.pattern.permute.xlu0 0
  %60 = vperm.xlu0 %59, %v22
  %v61 = vpop.permute.xlu0 %60
  %v63 = vlaneseq
  %v64 = vshrl.u32 %v63, 7
  %v65 = vsub.s32 5, %v64
  %v66 = vrot.slane %v23, %v65
  %v67 = vmul.f32 %v56, %v66
  %v68 = vmul.f32 %v61, %v66
  %v69 = vlaneseq
  %v70 = vshrl.u32 %v69, 7
  %v71 = vsub.s32 1, %v70
  %v72 = vrot.slane %v23, %v71
  %v73 = vadd.f32 %v72, %v67
  %v74 = vadd.f32 %v72, %v68
  %76 = vset.pattern.permute.xlu0 0
  %77 = vperm.xlu0 %76, %v19
  %v78 = vpop.permute.xlu0 %77
  %81 = vset.pattern.permute.xlu0 0
  %82 = vperm.xlu0 %81, %v20
  %v83 = vpop.permute.xlu0 %82
  %v85 = vlaneseq
  %v86 = vshrl.u32 %v85, 7
  %v87 = vsub.s32 4, %v86
  %v88 = vrot.slane %v23, %v87
  %v89 = vmul.f32 %v78, %v88
  %v90 = vmul.f32 %v83, %v88
  %v91 = vadd.f32 %v73, %v89
  %v92 = vadd.f32 %v74, %v90
  %v93 = vmax.f32 %v91, 0.0
  %v94 = vmax.f32 %v92, 0.0
  %96 = vset.pattern.permute.xlu0 0
  %97 = vperm.xlu0 %96, %v51
  %v98 = vpop.permute.xlu0 %97
  %101 = vset.pattern.permute.xlu0 0
  %102 = vperm.xlu0 %101, %v52
  %v103 = vpop.permute.xlu0 %102
  %v105 = vmul.f32 %v98, %v88
  %v106 = vmul.f32 %v103, %v88
  %v107 = vadd.f32 %v73, %v105
  %v108 = vadd.f32 %v74, %v106
  %v109 = vmax.f32 %v107, 0.0
  %v110 = vmax.f32 %v108, 0.0
  %v111 = vlaneseq
  %v112 = vshrl.u32 %v111, 7
  %v113 = vsub.s32 2, %v112
  %v114 = vrot.slane %v23, %v113
  %v115 = vmul.f32 %v93, %v114
  %v116 = vmul.f32 %v94, %v114
  %vm117 = vcmask 80896
  %v118 = vsel %vm117, %v115, 0.0
  %119 = vadd.xlane.f32.xlu0 %v118
  %v120 = vpop.xlane.xlu0 %119
  %v121 = vsel %vm117, %v116, 0.0
  %122 = vadd.xlane.f32.xlu0 %v121
  %v123 = vpop.xlane.xlu0 %122
  %v124 = vadd.f32 %v120, %v50
  %v125 = vadd.f32 %v123, %v50
  %v126 = vmul.f32 %v109, %v114
  %v127 = vmul.f32 %v110, %v114
  %v128 = vsel %vm117, %v126, 0.0
  %129 = vadd.xlane.f32.xlu0 %v128
  %v130 = vpop.xlane.xlu0 %129
  %v131 = vsel %vm117, %v127, 0.0
  %132 = vadd.xlane.f32.xlu0 %v131
  %v133 = vpop.xlane.xlu0 %132
  %v134 = vadd.f32 %v130, %v50
  %v135 = vadd.f32 %v133, %v50
  %v136 = vand.u32 2147483647, %v124
  %v137 = vand.u32 2147483647, %v125
  %v138 = vsub.f32 0.0, %v136
  %v139 = vsub.f32 0.0, %v137
  %v140 = vmul.f32 %v138, 1.442695
  %v141 = vpow.pop %v140
  %v142 = vmul.f32 %v139, 1.442695
  %v143 = vpow.pop %v142
  %v144 = vadd.f32 %v141, 1.0
  %v145 = vadd.f32 %v143, 1.0
  %v146 = vrcp.pop %v144
  %v147 = vrcp.pop %v145
  %v148 = vmul.f32 %v144, %v146
  %v149 = vmul.f32 %v145, %v147
  %v150 = vsub.f32 2.0, %v148
  %v151 = vsub.f32 2.0, %v149
  %v152 = vmul.f32 %v146, %v150
  %v153 = vmul.f32 %v147, %v151
  %vm154 = vcmp.ge.f32.partialorder %v124, 0.0
  %vm155 = vcmp.ge.f32.partialorder %v125, 0.0
  %v156 = vmul.f32 %v141, %v152
  %v157 = vmul.f32 %v143, %v153
  %v158 = vsel %vm154, %v152, %v156
  %v159 = vsel %vm155, %v153, %v157
  %v160 = vand.u32 2147483647, %v134
  %v161 = vand.u32 2147483647, %v135
  %v162 = vsub.f32 0.0, %v160
  %v163 = vsub.f32 0.0, %v161
  %v164 = vmul.f32 %v162, 1.442695
  %v165 = vpow.pop %v164
  %v166 = vmul.f32 %v163, 1.442695
  %v167 = vpow.pop %v166
  %v168 = vadd.f32 %v165, 1.0
  %v169 = vadd.f32 %v167, 1.0
  %v170 = vrcp.pop %v168
  %v171 = vrcp.pop %v169
  %v172 = vmul.f32 %v168, %v170
  %v173 = vmul.f32 %v169, %v171
  %v174 = vsub.f32 2.0, %v172
  %v175 = vsub.f32 2.0, %v173
  %v176 = vmul.f32 %v170, %v174
  %v177 = vmul.f32 %v171, %v175
  %vm178 = vcmp.ge.f32.partialorder %v134, 0.0
  %vm179 = vcmp.ge.f32.partialorder %v135, 0.0
  %v180 = vmul.f32 %v165, %v176
  %v181 = vmul.f32 %v167, %v177
  %v182 = vsel %vm178, %v176, %v180
  %v183 = vsel %vm179, %v177, %v181
  %v184 = vadd.f32 %v182, 1e-10
  %v185 = vadd.f32 %v183, 1e-10
  %v186 = vlog2.pop %v184
  %v187 = vmul.f32 %v186, 0.6931472
  %v188 = vlog2.pop %v185
  %v189 = vmul.f32 %v188, 0.6931472
  %vm190 = vcmask 15368
  %v191 = vsel %vm190, %v187, 0.0
  %v192 = vsel %vm190, %v189, 0.0
  %v193 = vadd.f32 %v191, %v192
  %v194 = vrot.slane %v193, 4
  %v195 = vadd.f32 %v193, %v194
  %v196 = vrot.slane %v195, 2
  %v197 = vadd.f32 %v195, %v196
  %v198 = vrot.slane %v197, 1
  %v199 = vadd.f32 %v197, %v198
  %v200 = vsub.f32 0.0, %v199
  %v201 = vmul.f32 %v200, 0.0625
  %v202 = vadd.f32 %v158, 1e-10
  %v203 = vadd.f32 %v159, 1e-10
  %v204 = vlog2.pop %v202
  %v205 = vmul.f32 %v204, 0.6931472
  %v206 = vlog2.pop %v203
  %v207 = vmul.f32 %v206, 0.6931472
  %v208 = vsub.f32 1.0, %v182
  %v209 = vsub.f32 1.0, %v183
  %v210 = vadd.f32 %v208, 1e-10
  %v211 = vadd.f32 %v209, 1e-10
  %v212 = vlog2.pop %v210
  %v213 = vmul.f32 %v212, 0.6931472
  %v214 = vlog2.pop %v211
  %v215 = vmul.f32 %v214, 0.6931472
  %v216 = vadd.f32 %v205, %v213
  %v217 = vadd.f32 %v207, %v215
  %v218 = vsel %vm190, %v216, 0.0
  %v219 = vsel %vm190, %v217, 0.0
  %v220 = vadd.f32 %v218, %v219
  %v221 = vrot.slane %v220, 4
  %v222 = vadd.f32 %v220, %v221
  %v223 = vrot.slane %v222, 2
  %v224 = vadd.f32 %v222, %v223
  %v225 = vrot.slane %v224, 1
  %v226 = vadd.f32 %v224, %v225
  %v227 = vsub.f32 0.0, %v226
  %v228 = vmul.f32 %v227, 0.0625
  %v229 = vlaneseq
  %v230 = vand.u32 %v229, 127
  %vm231 = vcmp.eq.s32.totalorder %v230, 0
  %vm232 = vcmp.eq.s32.totalorder %v230, 1
  %234 = vset.pattern.permute.xlu0 1
  %235 = vperm.xlu0 %234, %v228
  %v236 = vpop.permute.xlu0 %235
  %v238 = vsel %vm232, %v236, 0.0
  %240 = vset.pattern.permute.xlu0 1
  %241 = vperm.xlu0 %240, %v201
  %v242 = vpop.permute.xlu0 %241
  %v244 = vsel %vm231, %v242, %v238
  %245 = vst [vmem:[%s4] sm:$0xff] %v244
  // Predicated region
  $region18: #{gan_forward.1} parent=0 // pred_check
    _
  $region19: #{gan_forward.1} parent=0 // pred_check_branch
    %247 = sbr.rel (0) target = $region21
  $region20: #{gan_forward.1} parent=0 // pred_region
    _
  $region21: #{gan_forward.1} parent=0 // pred_fallthru
    _
  // Predicated region
  $region22: #{gan_forward.1} parent=0 // pred_check
    _
  $region23: #{gan_forward.1} parent=0 // pred_check_branch
    %249 = sbr.rel (0) target = $region25
  $region24: #{gan_forward.1} parent=0 // pred_region
    _
  $region25: #{gan_forward.1} parent=0 // pred_fallthru
    _

</llo_original>
